<compile_context>
chip_gen: v7x
topology: tpu7x:2x2x1
jax: 0.10.0
libtpu: 0.0.40
codegen_flags: <defaults>
</compile_context>

<pallas_src>
import functools

import jax
import jax.numpy as jnp
from jax.experimental import pallas as pl
from jax.experimental.pallas import tpu as pltpu


# ----------------------------- Pallas kernel ------------------------------ #
def _fused_two_conv_kernel(cols1_ref, w1_ref, b1_ref, w2_ref, b2_ref,
                           o1_ref, o2_ref, a1p_ref, *, wp, w, m, mp, mw):
    """Fused conv1 -> relu -> conv2 -> relu2 for one batch block.

    Lane-dense layouts (batch packed along the lane axis):
      cols1_ref: [1, 9*Cin, Mw] bf16  XLA-built conv1 im2col ("wide-wide" layout)
      w*_ref   : [Cout, 9*Cin]  bf16  b*_ref: [Cout, 1] f32
      o*_ref   : [1, Cout, Mw]  f32   wide-wide outputs (junk lanes dropped later)
      a1p_ref  : [C1, Bblk*mp]  bf16  scratch: re-padded relu(conv1), all images
    with m  = H*Wp        (per-image wide output width, 2 junk cols per row),
         mp = Hp*Wp + 2   (per-image padded width; +2 keeps the last tap in bounds),
         Mw = (Bblk-1)*mp + m.
    """
    offs = [di * wp + dj for di in range(3) for dj in range(3)]   # 9 tap offsets
    pad_start = wp + 1
    c1 = a1p_ref.shape[0]

    # ---- conv1: one K = 9*Cin matmul for the whole batch block (MXU, f32 acc) --- #
    acc1 = jnp.dot(w1_ref[...], cols1_ref[0],
                   preferred_element_type=jnp.float32) + b1_ref[...]
    o1_ref[0] = acc1                      # pre-ReLU hook value

    # ---- validity mask built in-kernel (no HBM mask input) ---------------------- #
    p = jax.lax.broadcasted_iota(jnp.int32, (1, mw), 1)
    q = p % mp                            # position within this image's segment
    valid = (q < m) & ((q % wp) < w)      # drop inter-image gaps + junk wide-cols

    # ---- relu1 once (f32 VPU), cast once to bf16, single re-padding store ------- #
    # scratch[pad_start + p] = relu1[p]; the masked junk/gap lanes land exactly on
    # the inter-image halo strips, so only the two edge strips need explicit zeros.
    a1v = jnp.where(valid, jnp.maximum(acc1, 0.0), 0.0).astype(jnp.bfloat16)
    a1p_ref[:, :pad_start] = jnp.zeros((c1, pad_start), jnp.bfloat16)
    a1p_ref[:, pad_start + mw:] = jnp.zeros(
        (c1, a1p_ref.shape[1] - pad_start - mw), jnp.bfloat16)
    a1p_ref[:, pad_start:pad_start + mw] = a1v

    # ---- conv2 + relu2: in-kernel tap gather, one K = 9*C1 matmul --------------- #
    taps2 = jnp.concatenate([a1p_ref[:, o:o + mw] for o in offs], axis=0)
    acc2 = jnp.dot(w2_ref[...], taps2,
                   preferred_element_type=jnp.float32) + b2_ref[...]
    o2_ref[0] = jnp.maximum(acc2, 0.0)


def fused_two_conv(x, w1, b1, w2, b2, *, bblk=None):
    """NCHW conv1(3x3,p=1) -> relu -> conv2(3x3,p=1) -> relu in one pallas_call.

    Returns (conv1_pre_relu, relu2) as NCHW f32 arrays.
    """
    B, Cin, H, W = x.shape
    C1, C2 = w1.shape[0], w2.shape[0]
    Hp, Wp = H + 2, W + 2
    m = H * Wp                   # per-image "wide" output width (2 junk cols / row)
    mp = Hp * Wp + 2             # per-image padded width (+2 keeps last tap in bounds)

    if bblk is None:
        # Pack the whole (small) batch into one step; fall back to 4-image blocks so
        # larger batches keep >= 2 grid steps (v7x has 2 TCs; on v5e/v6e a single
        # step is a pure win).
        bblk = B if B <= 4 else 4
    nb = pl.cdiv(B, bblk)
    bpad = nb * bblk
    mw = (bblk - 1) * mp + m     # wide-wide lane width of one batch block
    offs = [di * Wp + dj for di in range(3) for dj in range(3)]

    # Padded, flattened input with batch packed along lanes: [nb, Cin, Bblk*mp] bf16.
    xp = jnp.pad(x, ((0, bpad - B), (0, 0), (1, 1), (1, 1))).reshape(bpad, Cin, Hp * Wp)
    xp = jnp.pad(xp, ((0, 0), (0, 0), (0, mp - Hp * Wp)))
    xw = xp.reshape(nb, bblk, Cin, mp).transpose(0, 2, 1, 3).reshape(nb, Cin, bblk * mp)
    # XLA-side im2col for conv1 (9 shifted lane slices, ~18*Cin bytes/pixel -> cheap
    # at this size); keeps unaligned-slice relayouts off the kernel's critical path.
    # TODO(synk): for large H*W / Cin revert conv1 to the in-kernel flat-index gather
    # (im2col bytes ~18*Cin/pixel eventually dominate the ~4*(C1+C2)/pixel writeback).
    cols1 = jnp.concatenate([xw[:, :, o:o + mw] for o in offs],
                            axis=1).astype(jnp.bfloat16)        # [nb, 9*Cin, Mw]

    # OIHW -> [O, KH*KW*I] so one matmul contracts K = 9*Cin (PyTorch cross-corr).
    w1m = jnp.transpose(w1, (0, 2, 3, 1)).reshape(C1, 9 * Cin).astype(jnp.bfloat16)
    w2m = jnp.transpose(w2, (0, 2, 3, 1)).reshape(C2, 9 * C1).astype(jnp.bfloat16)
    b1c = b1.reshape(C1, 1).astype(jnp.float32)
    b2c = b2.reshape(C2, 1).astype(jnp.float32)

    kern = functools.partial(_fused_two_conv_kernel, wp=Wp, w=W, m=m, mp=mp, mw=mw)
    out1, out2 = pl.pallas_call(
        kern,
        # TODO(synk): at large H*W, tile rows with a 1-row halo and size the tile
        # against v7x's 64 MiB physical / 32 MiB scoped VMEM (the f32 outputs, not
        # the bf16 input, dominate); also consider bf16 hook outputs to halve
        # writeback bytes (kept f32 here for hook fidelity at this tiny size).
        out_shape=(jax.ShapeDtypeStruct((nb, C1, mw), jnp.float32),
                   jax.ShapeDtypeStruct((nb, C2, mw), jnp.float32)),
        grid_spec=pltpu.PrefetchScalarGridSpec(
            num_scalar_prefetch=0,
            grid=(nb,),
            in_specs=[
                pl.BlockSpec((1, 9 * Cin, mw), lambda b: (b, 0, 0)),
                pl.BlockSpec((C1, 9 * Cin), lambda b: (0, 0)),
                pl.BlockSpec((C1, 1), lambda b: (0, 0)),
                pl.BlockSpec((C2, 9 * C1), lambda b: (0, 0)),
                pl.BlockSpec((C2, 1), lambda b: (0, 0)),
            ],
            out_specs=(
                pl.BlockSpec((1, C1, mw), lambda b: (b, 0, 0)),
                pl.BlockSpec((1, C2, mw), lambda b: (b, 0, 0)),
            ),
            scratch_shapes=[pltpu.VMEM((C1, bblk * mp), jnp.bfloat16)],
        ),
        compiler_params=pltpu.CompilerParams(
            dimension_semantics=("parallel",),      # shard batch blocks across TCs
            vmem_limit_bytes=32 * 1024 * 1024,      # explicit budget, v5e/v6e/v7x safe
        ),
    )(cols1, w1m, b1c, w2m, b2c)

    # Wide-wide [nb, C, Mw] -> NCHW [B, C, H, W] (drop gaps + 2 junk cols per row).
    def unpack(out, c):
        padded = jnp.pad(out, ((0, 0), (0, 0), (0, bblk * mp - mw)))
        y = padded.reshape(nb, c, bblk, mp)[:, :, :, :m]
        y = jnp.transpose(y, (0, 2, 1, 3)).reshape(bpad, c, H, Wp)[..., :W]
        return y[:B]

    return unpack(out1, C1), unpack(out2, C2)


# ------------------------------- JAX glue --------------------------------- #
def init_params():
    """Deterministic synthetic parameters (PyTorch Conv2d OIHW convention)."""
    k1, k2, k3, k4 = jax.random.split(jax.random.PRNGKey(42), 4)
    w1 = jax.random.normal(k1, (8, 4, 3, 3), jnp.float32) * 0.1
    b1 = jax.random.normal(k2, (8,), jnp.float32) * 0.1
    w2 = jax.random.normal(k3, (8, 8, 3, 3), jnp.float32) * 0.1
    b2 = jax.random.normal(k4, (8,), jnp.float32) * 0.1
    return {"conv1": (w1, b1), "conv2": (w2, b2)}


def make_model(params):
    """conv1 -> relu1 -> conv2 -> relu2; returns (final_out, {layer: activation})."""
    w1, b1 = params["conv1"]
    w2, b2 = params["conv2"]

    @jax.jit
    def model_fn(x):                               # x: NCHW
        a1, a2 = fused_two_conv(x, w1, b1, w2, b2)
        return a2, {"conv1": a1, "relu2": a2}

    return model_fn


class NeuroElectrodeArray:
    """JAX/Pallas port of the hook-based feature extractor.

    forward(x) runs the wrapped model and returns {layer_name: activation}.
    detach / clone / .to(device) are no-ops under JAX (immutable arrays,
    device placement handled by the runtime), so they are accepted but ignored.
    """

    def __init__(self, model_fn, layers, retain=True, detach=True, clone=True, device=None):
        layers = [layers] if isinstance(layers, str) else list(layers)
        self.model_fn = model_fn
        self.layers = layers
        self.retain = retain
        self.detach = detach      # no-op in JAX
        self.clone = clone        # no-op in JAX
        self.device = device      # no-op in JAX
        self._activations = {layer: None for layer in layers}
        self._hooked = False

    def hook_layers(self):
        self.remove_hooks()
        self._hooked = True

    def remove_hooks(self):
        if not self.retain:
            self._activations = {layer: None for layer in self.layers}
        self._hooked = False

    def __enter__(self):
        self.hook_layers()
        return self

    def __exit__(self, *args):
        self.remove_hooks()

    def __call__(self, x, **kwargs):
        return self.forward(x, **kwargs)

    def forward(self, x, **kwargs):
        _, acts = self.model_fn(x, **kwargs)
        if self._hooked:
            for layer in self.layers:
                self._activations[layer] = acts[layer]
        return dict(self._activations)


if __name__ == "__main__":
    x = jax.random.normal(jax.random.PRNGKey(0), (2, 4, 16, 16), jnp.float32)
    params = init_params()
    model_fn = make_model(params)

    with NeuroElectrodeArray(model_fn, ["conv1", "relu2"]) as electrode:
        activations = electrode(x)
        jax.block_until_ready(activations)

    # Reference: same math as the PyTorch model; inputs/weights mirrored to bf16
    # because the kernel feeds the MXU in bf16 with f32 accumulation, and relu1 is
    # quantized to bf16 like the VMEM scratch.
    def q(a):
        return a.astype(jnp.bfloat16).astype(jnp.float32)

    w1, b1 = params["conv1"]
    w2, b2 = params["conv2"]
    dn = ("NCHW", "OIHW", "NCHW")
    hi = jax.lax.Precision.HIGHEST
    ref1 = jax.lax.conv_general_dilated(q(x), q(w1), (1, 1), "SAME",
                                        dimension_numbers=dn, precision=hi) \
        + b1[None, :, None, None]
    a1r = q(jnp.maximum(ref1, 0.0))
    ref2 = jnp.maximum(
        jax.lax.conv_general_dilated(a1r, q(w2), (1, 1), "SAME",
                                     dimension_numbers=dn, precision=hi)
        + b2[None, :, None, None],
        0.0)

    assert activations["conv1"].shape == (2, 8, 16, 16)
    assert activations["relu2"].shape == (2, 8, 16, 16)
    assert jnp.max(jnp.abs(activations["conv1"] - ref1)) < 1e-2
    assert jnp.max(jnp.abs(activations["relu2"] - ref2)) < 1e-2
    print("KERNEL_OK")
</pallas_src>

<mosaic_0001>
module attributes {stable_mosaic.version = 11 : i64} {
  func.func @_fused_two_conv_kernel(%arg0: i32, %arg1: memref<1x36x614xbf16, #tpu.memory_space<vmem>>, %arg2: memref<8x36xbf16, #tpu.memory_space<vmem>>, %arg3: memref<8x1xf32, #tpu.memory_space<vmem>>, %arg4: memref<8x72xbf16, #tpu.memory_space<vmem>>, %arg5: memref<8x1xf32, #tpu.memory_space<vmem>>, %arg6: memref<1x8x614xf32, #tpu.memory_space<vmem>>, %arg7: memref<1x8x614xf32, #tpu.memory_space<vmem>>, %arg8: memref<8x652xbf16, #tpu.memory_space<vmem>>) attributes {dimension_semantics = [#tpu.dimension_semantics<parallel>], iteration_bounds = array<i64: 1>, scalar_prefetch = 0 : i64, scratch_operands = 1 : i64, tpu.core_type = #tpu.core_type<tc>, window_params = [{transform_indices = @transform_0, window_bounds = array<i64: 1, 36, 614>}, {pipeline_mode = #tpu.pipeline_mode<synchronous>, transform_indices = @transform_1, window_bounds = array<i64: 8, 36>}, {pipeline_mode = #tpu.pipeline_mode<synchronous>, transform_indices = @transform_2, window_bounds = array<i64: 8, 1>}, {pipeline_mode = #tpu.pipeline_mode<synchronous>, transform_indices = @transform_3, window_bounds = array<i64: 8, 72>}, {pipeline_mode = #tpu.pipeline_mode<synchronous>, transform_indices = @transform_4, window_bounds = array<i64: 8, 1>}, {transform_indices = @transform_5, window_bounds = array<i64: 1, 8, 614>}, {transform_indices = @transform_6, window_bounds = array<i64: 1, 8, 614>}]} {
    %c0 = arith.constant 0 : index
    %c0_0 = arith.constant 0 : index
    %0 = vector.load %arg2[%c0, %c0_0] : memref<8x36xbf16, #tpu.memory_space<vmem>>, vector<8x36xbf16>
    %c0_1 = arith.constant 0 : index
    %c0_2 = arith.constant 0 : index
    %c0_3 = arith.constant 0 : index
    %1 = vector.load %arg1[%c0_1, %c0_2, %c0_3] : memref<1x36x614xbf16, #tpu.memory_space<vmem>>, vector<1x36x614xbf16>
    %2 = vector.shape_cast %1 : vector<1x36x614xbf16> to vector<36x614xbf16>
    %cst = arith.constant dense<0.000000e+00> : vector<8x614xf32>
    %3 = tpu.matmul %0, %2, %cst {dimension_numbers = #tpu.dot_dimension_numbers<[1], [0], [0], [1], [0, 0, 1, 1], [], []>} : vector<8x36xbf16>, vector<36x614xbf16>, vector<8x614xf32> -> vector<8x614xf32>
    %c0_4 = arith.constant 0 : index
    %c0_5 = arith.constant 0 : index
    %4 = vector.load %arg3[%c0_4, %c0_5] : memref<8x1xf32, #tpu.memory_space<vmem>>, vector<8x1xf32>
    %5 = vector.broadcast %4 : vector<8x1xf32> to vector<8x614xf32>
    %6 = arith.addf %3, %5 : vector<8x614xf32>
    %c0_6 = arith.constant 0 : index
    %c0_7 = arith.constant 0 : index
    %c0_8 = arith.constant 0 : index
    %7 = vector.load %arg6[%c0_6, %c0_7, %c0_8] : memref<1x8x614xf32, #tpu.memory_space<vmem>>, vector<1x8x614xf32>
    %8 = vector.shape_cast %7 : vector<1x8x614xf32> to vector<8x614xf32>
    %9 = vector.shape_cast %6 : vector<8x614xf32> to vector<1x8x614xf32>
    tpu.vector_store %arg6[%c0_6, %c0_7, %c0_8], %9 {strides = array<i32>} : memref<1x8x614xf32, #tpu.memory_space<vmem>>, vector<1x8x614xf32>,
    %10 = tpu.iota {dimensions = array<i32: 1>} : vector<1x614xi32>
    %c326_i32 = arith.constant 326 : i32
    %c0_i32 = arith.constant 0 : i32
    %11 = arith.cmpi eq, %c326_i32, %c0_i32 : i32
    %c1_i32 = arith.constant 1 : i32
    %12 = arith.select %11, %c1_i32, %c326_i32 : i32
    %13 = vector.broadcast %12 : i32 to vector<1x614xi32>
    %14 = arith.remsi %10, %13 : vector<1x614xi32>
    %c0_i32_9 = arith.constant 0 : i32
    %15 = vector.broadcast %c0_i32_9 : i32 to vector<1x614xi32>
    %16 = arith.cmpi ne, %14, %15 : vector<1x614xi32>
    %c0_i32_10 = arith.constant 0 : i32
    %17 = vector.broadcast %c0_i32_10 : i32 to vector<1x614xi32>
    %18 = arith.cmpi slt, %14, %17 : vector<1x614xi32>
    %c0_i32_11 = arith.constant 0 : i32
    %19 = arith.cmpi slt, %12, %c0_i32_11 : i32
    %20 = vector.broadcast %19 : i1 to vector<1x614xi1>
    %21 = vector.broadcast %20 : vector<1x614xi1> to vector<1x614xi1>
    %22 = arith.xori %18, %21 : vector<1x614xi1>
    %23 = arith.andi %22, %16 : vector<1x614xi1>
    %24 = vector.broadcast %12 : i32 to vector<1x614xi32>
    %25 = arith.addi %14, %24 : vector<1x614xi32>
    %26 = arith.select %23, %25, %14 : vector<1x614xi1>, vector<1x614xi32>
    %c288_i32 = arith.constant 288 : i32
    %27 = vector.broadcast %c288_i32 : i32 to vector<1x614xi32>
    %28 = arith.cmpi slt, %26, %27 : vector<1x614xi32>
    %c18_i32 = arith.constant 18 : i32
    %c0_i32_12 = arith.constant 0 : i32
    %29 = arith.cmpi eq, %c18_i32, %c0_i32_12 : i32
    %c1_i32_13 = arith.constant 1 : i32
    %30 = arith.select %29, %c1_i32_13, %c18_i32 : i32
    %31 = vector.broadcast %30 : i32 to vector<1x614xi32>
    %32 = arith.remsi %26, %31 : vector<1x614xi32>
    %c0_i32_14 = arith.constant 0 : i32
    %33 = vector.broadcast %c0_i32_14 : i32 to vector<1x614xi32>
    %34 = arith.cmpi ne, %32, %33 : vector<1x614xi32>
    %c0_i32_15 = arith.constant 0 : i32
    %35 = vector.broadcast %c0_i32_15 : i32 to vector<1x614xi32>
    %36 = arith.cmpi slt, %32, %35 : vector<1x614xi32>
    %c0_i32_16 = arith.constant 0 : i32
    %37 = arith.cmpi slt, %30, %c0_i32_16 : i32
    %38 = vector.broadcast %37 : i1 to vector<1x614xi1>
    %39 = vector.broadcast %38 : vector<1x614xi1> to vector<1x614xi1>
    %40 = arith.xori %36, %39 : vector<1x614xi1>
    %41 = arith.andi %40, %34 : vector<1x614xi1>
    %42 = vector.broadcast %30 : i32 to vector<1x614xi32>
    %43 = arith.addi %32, %42 : vector<1x614xi32>
    %44 = arith.select %41, %43, %32 : vector<1x614xi1>, vector<1x614xi32>
    %c16_i32 = arith.constant 16 : i32
    %45 = vector.broadcast %c16_i32 : i32 to vector<1x614xi32>
    %46 = arith.cmpi slt, %44, %45 : vector<1x614xi32>
    %47 = arith.andi %28, %46 : vector<1x614xi1>
    %cst_17 = arith.constant 0.000000e+00 : f32
    %48 = vector.broadcast %cst_17 : f32 to vector<8x614xf32>
    %49 = arith.maximumf %6, %48 : vector<8x614xf32>
    %cst_18 = arith.constant 0.000000e+00 : f32
    %50 = vector.shape_cast %47 : vector<1x614xi1> to vector<1x614xi1>
    %51 = vector.broadcast %50 : vector<1x614xi1> to vector<8x614xi1>
    %52 = vector.broadcast %cst_18 : f32 to vector<8x614xf32>
    %53 = arith.select %51, %49, %52 : vector<8x614xi1>, vector<8x614xf32>
    %54 = arith.truncf %53 : vector<8x614xf32> to vector<8x614xbf16>
    %cst_19 = arith.constant 0.000000e+00 : bf16
    %55 = vector.broadcast %cst_19 : bf16 to vector<8x19xbf16>
    %c0_20 = arith.constant 0 : index
    %c0_21 = arith.constant 0 : index
    %56 = vector.load %arg8[%c0_20, %c0_21] : memref<8x652xbf16, #tpu.memory_space<vmem>>, vector<8x19xbf16>
    tpu.vector_store %arg8[%c0_20, %c0_21], %55 {strides = array<i32>} : memref<8x652xbf16, #tpu.memory_space<vmem>>, vector<8x19xbf16>,
    %cst_22 = arith.constant 0.000000e+00 : bf16
    %57 = vector.broadcast %cst_22 : bf16 to vector<8x19xbf16>
    %c0_23 = arith.constant 0 : index
    %c633 = arith.constant 633 : index
    %58 = vector.load %arg8[%c0_23, %c633] : memref<8x652xbf16, #tpu.memory_space<vmem>>, vector<8x19xbf16>
    tpu.vector_store %arg8[%c0_23, %c633], %57 {strides = array<i32>} : memref<8x652xbf16, #tpu.memory_space<vmem>>, vector<8x19xbf16>,
    %c0_24 = arith.constant 0 : index
    %c19 = arith.constant 19 : index
    %59 = vector.load %arg8[%c0_24, %c19] : memref<8x652xbf16, #tpu.memory_space<vmem>>, vector<8x614xbf16>
    tpu.vector_store %arg8[%c0_24, %c19], %54 {strides = array<i32>} : memref<8x652xbf16, #tpu.memory_space<vmem>>, vector<8x614xbf16>,
    %c0_25 = arith.constant 0 : index
    %c0_26 = arith.constant 0 : index
    %60 = vector.load %arg8[%c0_25, %c0_26] : memref<8x652xbf16, #tpu.memory_space<vmem>>, vector<8x614xbf16>
    %c0_27 = arith.constant 0 : index
    %c1 = arith.constant 1 : index
    %61 = vector.load %arg8[%c0_27, %c1] : memref<8x652xbf16, #tpu.memory_space<vmem>>, vector<8x614xbf16>
    %c0_28 = arith.constant 0 : index
    %c2 = arith.constant 2 : index
    %62 = vector.load %arg8[%c0_28, %c2] : memref<8x652xbf16, #tpu.memory_space<vmem>>, vector<8x614xbf16>
    %c0_29 = arith.constant 0 : index
    %c18 = arith.constant 18 : index
    %63 = vector.load %arg8[%c0_29, %c18] : memref<8x652xbf16, #tpu.memory_space<vmem>>, vector<8x614xbf16>
    %c0_30 = arith.constant 0 : index
    %c19_31 = arith.constant 19 : index
    %64 = vector.load %arg8[%c0_30, %c19_31] : memref<8x652xbf16, #tpu.memory_space<vmem>>, vector<8x614xbf16>
    %c0_32 = arith.constant 0 : index
    %c20 = arith.constant 20 : index
    %65 = vector.load %arg8[%c0_32, %c20] : memref<8x652xbf16, #tpu.memory_space<vmem>>, vector<8x614xbf16>
    %c0_33 = arith.constant 0 : index
    %c36 = arith.constant 36 : index
    %66 = vector.load %arg8[%c0_33, %c36] : memref<8x652xbf16, #tpu.memory_space<vmem>>, vector<8x614xbf16>
    %c0_34 = arith.constant 0 : index
    %c37 = arith.constant 37 : index
    %67 = vector.load %arg8[%c0_34, %c37] : memref<8x652xbf16, #tpu.memory_space<vmem>>, vector<8x614xbf16>
    %c0_35 = arith.constant 0 : index
    %c38 = arith.constant 38 : index
    %68 = vector.load %arg8[%c0_35, %c38] : memref<8x652xbf16, #tpu.memory_space<vmem>>, vector<8x614xbf16>
    %69 = tpu.concatenate %60, %61, %62, %63, %64, %65, %66, %67, %68 in 0 : vector<8x614xbf16>, vector<8x614xbf16>, vector<8x614xbf16>, vector<8x614xbf16>, vector<8x614xbf16>, vector<8x614xbf16>, vector<8x614xbf16>, vector<8x614xbf16>, vector<8x614xbf16> -> vector<72x614xbf16>
    %c0_36 = arith.constant 0 : index
    %c0_37 = arith.constant 0 : index
    %70 = vector.load %arg4[%c0_36, %c0_37] : memref<8x72xbf16, #tpu.memory_space<vmem>>, vector<8x72xbf16>
    %cst_38 = arith.constant dense<0.000000e+00> : vector<8x614xf32>
    %71 = tpu.matmul %70, %69, %cst_38 {dimension_numbers = #tpu.dot_dimension_numbers<[1], [0], [0], [1], [0, 0, 1, 1], [], []>} : vector<8x72xbf16>, vector<72x614xbf16>, vector<8x614xf32> -> vector<8x614xf32>
    %c0_39 = arith.constant 0 : index
    %c0_40 = arith.constant 0 : index
    %72 = vector.load %arg5[%c0_39, %c0_40] : memref<8x1xf32, #tpu.memory_space<vmem>>, vector<8x1xf32>
    %73 = vector.broadcast %72 : vector<8x1xf32> to vector<8x614xf32>
    %74 = arith.addf %71, %73 : vector<8x614xf32>
    %cst_41 = arith.constant 0.000000e+00 : f32
    %75 = vector.broadcast %cst_41 : f32 to vector<8x614xf32>
    %76 = arith.maximumf %74, %75 : vector<8x614xf32>
    %c0_42 = arith.constant 0 : index
    %c0_43 = arith.constant 0 : index
    %c0_44 = arith.constant 0 : index
    %77 = vector.load %arg7[%c0_42, %c0_43, %c0_44] : memref<1x8x614xf32, #tpu.memory_space<vmem>>, vector<1x8x614xf32>
    %78 = vector.shape_cast %77 : vector<1x8x614xf32> to vector<8x614xf32>
    %79 = vector.shape_cast %76 : vector<8x614xf32> to vector<1x8x614xf32>
    tpu.vector_store %arg7[%c0_42, %c0_43, %c0_44], %79 {strides = array<i32>} : memref<1x8x614xf32, #tpu.memory_space<vmem>>, vector<1x8x614xf32>,
    return
  }
  func.func @transform_0(%arg0: i32) -> (i32, i32, i32) {
    %c0_i32 = arith.constant 0 : i32
    %c0_i32_0 = arith.constant 0 : i32
    %c0_i32_1 = arith.constant 0 : i32
    return %arg0, %c0_i32, %c0_i32_0 : i32, i32, i32
  }
  func.func @transform_1(%arg0: i32) -> (i32, i32) {
    %c0_i32 = arith.constant 0 : i32
    %c0_i32_0 = arith.constant 0 : i32
    %c0_i32_1 = arith.constant 0 : i32
    return %c0_i32, %c0_i32_0 : i32, i32
  }
  func.func @transform_2(%arg0: i32) -> (i32, i32) {
    %c0_i32 = arith.constant 0 : i32
    %c0_i32_0 = arith.constant 0 : i32
    %c0_i32_1 = arith.constant 0 : i32
    return %c0_i32, %c0_i32_0 : i32, i32
  }
  func.func @transform_3(%arg0: i32) -> (i32, i32) {
    %c0_i32 = arith.constant 0 : i32
    %c0_i32_0 = arith.constant 0 : i32
    %c0_i32_1 = arith.constant 0 : i32
    return %c0_i32, %c0_i32_0 : i32, i32
  }
  func.func @transform_4(%arg0: i32) -> (i32, i32) {
    %c0_i32 = arith.constant 0 : i32
    %c0_i32_0 = arith.constant 0 : i32
    %c0_i32_1 = arith.constant 0 : i32
    return %c0_i32, %c0_i32_0 : i32, i32
  }
  func.func @transform_5(%arg0: i32) -> (i32, i32, i32) {
    %c0_i32 = arith.constant 0 : i32
    %c0_i32_0 = arith.constant 0 : i32
    %c0_i32_1 = arith.constant 0 : i32
    return %arg0, %c0_i32, %c0_i32_0 : i32, i32, i32
  }
  func.func @transform_6(%arg0: i32) -> (i32, i32, i32) {
    %c0_i32 = arith.constant 0 : i32
    %c0_i32_0 = arith.constant 0 : i32
    %c0_i32_1 = arith.constant 0 : i32
    return %arg0, %c0_i32, %c0_i32_0 : i32, i32, i32
  }
}

</mosaic_0001>

<llo_original>
// kernel: model_fn.1
$region0: #{model_fn.1}
  #allocation0 [shape = 'u32[]', space=smem, size = 0x4, offset = 0x4, fixed_abs, tag = 'smem constant byte address 0x4 - core index']
  #allocation1 [shape = 'u32[144,128]{1,0:T(1,128)}', space=vmem, size = 0x12000, scoped, tag = 'internal scratch']
  #allocation2 [shape = 'bf16[8,652]{1,0:T(8,128)(2,1)}', space=vmem, size = 0x3000, scoped, tag = 'scratch operand']
  %s0 = inlined_call_operand.vmem [shape: bf16[1,36,614], index: 0, kind: input, shape index: {}]
  %s1 = inlined_call_operand.vmem [shape: bf16[8,36], index: 1, kind: input, shape index: {}]
  %s2 = inlined_call_operand.vmem [shape: f32[8,1], index: 2, kind: input, shape index: {}]
  %s3 = inlined_call_operand.vmem [shape: bf16[8,72], index: 3, kind: input, shape index: {}]
  %s4 = inlined_call_operand.vmem [shape: f32[8,1], index: 4, kind: input, shape index: {}]
  %s5 = inlined_call_operand.vmem [shape: f32[1,8,614], index: 5, kind: output, shape index: {0}]
  %s6 = inlined_call_operand.vmem [shape: f32[1,8,614], index: 6, kind: output, shape index: {1}]
  %7 = xla_tuple %s5, %s6
  %s8 = sld [smem:[#allocation0]]
  $region38: #{model_fn.1} parent=0
    _
  %s10 = ssub.s32 1, %s8
  %s11 = scalar_select 0, %s10, %s8
  // Predicated region
  $region2: #{model_fn.1} parent=0 // pred_check
    _
  $region3: #{model_fn.1} parent=0 // pred_check_branch
    %13 = sbr.rel (0) target = $region5
  $region4: #{model_fn.1} parent=0 // pred_region
    _
  $region5: #{model_fn.1} parent=0 // pred_fallthru
    _
  // Predicated region
  $region6: #{model_fn.1} parent=0 // pred_check
    _
  $region7: #{model_fn.1} parent=0 // pred_check_branch
    %15 = sbr.rel (0) target = $region9
  $region8: #{model_fn.1} parent=0 // pred_region
    _
  $region9: #{model_fn.1} parent=0 // pred_fallthru
    _
  // Predicated region
  $region10: #{model_fn.1} parent=0 // pred_check
    _
  $region11: #{model_fn.1} parent=0 // pred_check_branch
    %17 = sbr.rel (0) target = $region13
  $region12: #{model_fn.1} parent=0 // pred_region
    _
  $region13: #{model_fn.1} parent=0 // pred_fallthru
    _
  // Predicated region
  $region14: #{model_fn.1} parent=0 // pred_check
    _
  $region15: #{model_fn.1} parent=0 // pred_check_branch
    %19 = sbr.rel (0) target = $region17
  $region16: #{model_fn.1} parent=0 // pred_region
    _
  $region17: #{model_fn.1} parent=0 // pred_fallthru
    _
  // Predicated region
  $region18: #{model_fn.1} parent=0 // pred_check
    _
  $region19: #{model_fn.1} parent=0 // pred_check_branch
    %21 = sbr.rel (0) target = $region21
  $region20: #{model_fn.1} parent=0 // pred_region
    _
  $region21: #{model_fn.1} parent=0 // pred_fallthru
    _
  %v23 = vld [vmem:[%s1] sm:$0xf]
  %v24 = vld [vmem:[%s0] sm:$0xff]
  %v25 = vld [vmem:[%s0 + $0x8] sm:$0xff]
  %v26 = vld [vmem:[%s0 + $0x10] sm:$0xf]
  %v27 = vld [vmem:[%s0 + $0x14] sm:$0xff]
  %v28 = vld [vmem:[%s0 + $0x1c] sm:$0xff]
  %v29 = vld [vmem:[%s0 + $0x24] sm:$0xf]
  %v30 = vld [vmem:[%s0 + $0x28] sm:$0xff]
  %v31 = vld [vmem:[%s0 + $0x30] sm:$0xff]
  %v32 = vld [vmem:[%s0 + $0x38] sm:$0xf]
  %v33 = vld [vmem:[%s0 + $0x3c] sm:$0xff]
  %v34 = vld [vmem:[%s0 + $0x44] sm:$0xff]
  %v35 = vld [vmem:[%s0 + $0x4c] sm:$0xf]
  %v36 = vld [vmem:[%s0 + $0x50] sm:$0x33]
  %v37 = vld [vmem:[%s0 + $0x58] sm:$0x33]
  %v38 = vld [vmem:[%s0 + $0x60] sm:$0x3]
  %v39 = vld [vmem:[%s2] sm:$0xff]
  %41 = vset.pattern.permute.xlu0 0
  %42 = vperm.xlu0 %41, %v39
  %v43 = vpop.permute.xlu0 %42
  %v60 = vunpack.c.l.b16 %v24
  %v61 = vunpack.c.h.b16 %v24
  %v62 = vunpack.c.l.b16 %v25
  %v63 = vunpack.c.h.b16 %v25
  %v64 = vunpack.c.l.b16 %v26
  %v65 = vunpack.c.l.b16 %v27
  %v66 = vunpack.c.h.b16 %v27
  %v67 = vunpack.c.l.b16 %v28
  %v68 = vunpack.c.h.b16 %v28
  %v69 = vunpack.c.l.b16 %v29
  %v70 = vunpack.c.l.b16 %v30
  %v71 = vunpack.c.h.b16 %v30
  %v72 = vunpack.c.l.b16 %v31
  %v73 = vunpack.c.h.b16 %v31
  %v74 = vunpack.c.l.b16 %v32
  %v75 = vunpack.c.l.b16 %v33
  %v76 = vunpack.c.h.b16 %v33
  %v77 = vunpack.c.l.b16 %v34
  %v78 = vunpack.c.h.b16 %v34
  %v79 = vunpack.c.l.b16 %v35
  %v80 = vunpack.c.l.b16 %v36
  %v81 = vunpack.c.h.b16 %v36
  %v82 = vunpack.c.l.b16 %v37
  %v83 = vunpack.c.h.b16 %v37
  %v84 = vunpack.c.l.b16 %v38
  %v85 = vpack.c.b16 %v65, %v60
  %v86 = vpack.c.b16 %v66, %v61
  %v87 = vpack.c.b16 %v67, %v62
  %v88 = vpack.c.b16 %v68, %v63
  %v89 = vpack.c.b16 %v69, %v64
  %v90 = vpack.c.b16 %v75, %v70
  %v91 = vpack.c.b16 %v76, %v71
  %v92 = vpack.c.b16 %v77, %v72
  %v93 = vpack.c.b16 %v78, %v73
  %v94 = vpack.c.b16 %v79, %v74
  %v95 = vpack.c.b16 %v80, %v80
  %v96 = vpack.c.b16 %v81, %v81
  %v97 = vpack.c.b16 %v82, %v82
  %v98 = vpack.c.b16 %v83, %v83
  %v99 = vpack.c.b16 %v84, %v84
  %vm110 = vcmask 293888
  %v112 = vsel %vm110, %v23, 0
  %vm114 = vcmask 1041408
  %v116 = vsel %vm114, %v95, 0
  %v119 = vsel %vm114, %v96, 0
  %v122 = vsel %vm114, %v97, 0
  %v125 = vsel %vm114, %v98, 0
  %v128 = vsel %vm114, %v99, 0
  %130 = vmatprep.subr.bf16.mxu0 %v86
  %131 = vmatpush1.bf16.msra.mxu0 %v85
  %132 = vmatprep.subr.bf16.mxu0 %v91
  %133 = vmatpush1.bf16.msra.mxu0 %v90
  %134 = vmatprep.subr.bf16.mxu0 %v119
  %135 = vmatpush1.bf16.msra.mxu0 %v116
  %136 = vmatprep.subr.bf16.mxu0 0
  %137 = vmatpush1.bf16.msra.mxu0 0
  %138 = vmatprep.subr.bf16.mxu0 0
  %139 = vmatpush1.bf16.msra.mxu0 0
  %140 = vmatprep.subr.bf16.mxu0 0
  %141 = vmatpush1.bf16.msra.mxu0 0
  %142 = vmatprep.subr.bf16.mxu0 0
  %143 = vmatpush1.bf16.msra.mxu0 0
  %144 = vmatprep.subr.bf16.mxu0 0
  %145 = vmatpush1.bf16.msra.mxu0 0
  %146 = vmatprep.subr.bf16.mxu0 0
  %147 = vmatpush1.bf16.msra.mxu0 0
  %148 = vmatprep.subr.bf16.mxu0 0
  %149 = vmatpush1.bf16.msra.mxu0 0
  %150 = vmatprep.subr.bf16.mxu0 0
  %151 = vmatpush1.bf16.msra.mxu0 0
  %152 = vmatprep.subr.bf16.mxu0 0
  %153 = vmatpush1.bf16.msra.mxu0 0
  %154 = vmatprep.subr.bf16.mxu0 0
  %155 = vmatpush1.bf16.msra.mxu0 0
  %156 = vmatprep.subr.bf16.mxu0 0
  %157 = vmatpush1.bf16.msra.mxu0 0
  %158 = vmatprep.subr.bf16.mxu0 0
  %159 = vmatpush1.bf16.msra.mxu0 0
  %160 = vmatprep.subr.bf16.mxu0 0
  %161 = vmatpush1.bf16.msra.mxu0 0
  %162 = vmatprep.mubr.bf16.mxu0 0
  %163 = vmatmul.mubr.bf16.gmra.mrb[0].mxu0 %v112
  %v164 = vpop.f32.mrb[0].mxu0
  %v165 = vadd.f32 %v43, %v164
  %v166 = vpop.f32.mrb[0].mxu0
  %v167 = vadd.f32 %v43, %v166
  %v168 = vpop.f32.mrb[0].mxu0
  %v169 = vpop.f32.mrb[0].mxu0
  %170 = vdwg.mxu0
  %171 = vmatprep.subr.bf16.mxu0 %v88
  %172 = vmatpush1.bf16.msra.mxu0 %v87
  %173 = vmatprep.subr.bf16.mxu0 %v93
  %174 = vmatpush1.bf16.msra.mxu0 %v92
  %175 = vmatprep.subr.bf16.mxu0 %v125
  %176 = vmatpush1.bf16.msra.mxu0 %v122
  %177 = vmatprep.subr.bf16.mxu0 0
  %178 = vmatpush1.bf16.msra.mxu0 0
  %179 = vmatprep.subr.bf16.mxu0 0
  %180 = vmatpush1.bf16.msra.mxu0 0
  %181 = vmatprep.subr.bf16.mxu0 0
  %182 = vmatpush1.bf16.msra.mxu0 0
  %183 = vmatprep.subr.bf16.mxu0 0
  %184 = vmatpush1.bf16.msra.mxu0 0
  %185 = vmatprep.subr.bf16.mxu0 0
  %186 = vmatpush1.bf16.msra.mxu0 0
  %187 = vmatprep.subr.bf16.mxu0 0
  %188 = vmatpush1.bf16.msra.mxu0 0
  %189 = vmatprep.subr.bf16.mxu0 0
  %190 = vmatpush1.bf16.msra.mxu0 0
  %191 = vmatprep.subr.bf16.mxu0 0
  %192 = vmatpush1.bf16.msra.mxu0 0
  %193 = vmatprep.subr.bf16.mxu0 0
  %194 = vmatpush1.bf16.msra.mxu0 0
  %195 = vmatprep.subr.bf16.mxu0 0
  %196 = vmatpush1.bf16.msra.mxu0 0
  %197 = vmatprep.subr.bf16.mxu0 0
  %198 = vmatpush1.bf16.msra.mxu0 0
  %199 = vmatprep.subr.bf16.mxu0 0
  %200 = vmatpush1.bf16.msra.mxu0 0
  %201 = vmatprep.subr.bf16.mxu0 0
  %202 = vmatpush1.bf16.msra.mxu0 0
  %203 = vmatprep.mubr.bf16.mxu0 0
  %204 = vmatmul.mubr.bf16.gmra.mrb[0].mxu0 %v112
  %v205 = vpop.f32.mrb[0].mxu0
  %v206 = vadd.f32 %v43, %v205
  %v207 = vpop.f32.mrb[0].mxu0
  %v208 = vadd.f32 %v43, %v207
  %v209 = vpop.f32.mrb[0].mxu0
  %v210 = vpop.f32.mrb[0].mxu0
  %211 = vdwg.mxu0
  %212 = vmatprep.subr.bf16.mxu0 0
  %213 = vmatpush1.bf16.msra.mxu0 %v89
  %214 = vmatprep.subr.bf16.mxu0 0
  %215 = vmatpush1.bf16.msra.mxu0 %v94
  %216 = vmatprep.subr.bf16.mxu0 0
  %217 = vmatpush1.bf16.msra.mxu0 %v128
  %218 = vmatprep.subr.bf16.mxu0 0
  %219 = vmatpush1.bf16.msra.mxu0 0
  %220 = vmatprep.subr.bf16.mxu0 0
  %221 = vmatpush1.bf16.msra.mxu0 0
  %222 = vmatprep.subr.bf16.mxu0 0
  %223 = vmatpush1.bf16.msra.mxu0 0
  %224 = vmatprep.subr.bf16.mxu0 0
  %225 = vmatpush1.bf16.msra.mxu0 0
  %226 = vmatprep.subr.bf16.mxu0 0
  %227 = vmatpush1.bf16.msra.mxu0 0
  %228 = vmatprep.subr.bf16.mxu0 0
  %229 = vmatpush1.bf16.msra.mxu0 0
  %230 = vmatprep.subr.bf16.mxu0 0
  %231 = vmatpush1.bf16.msra.mxu0 0
  %232 = vmatprep.subr.bf16.mxu0 0
  %233 = vmatpush1.bf16.msra.mxu0 0
  %234 = vmatprep.subr.bf16.mxu0 0
  %235 = vmatpush1.bf16.msra.mxu0 0
  %236 = vmatprep.subr.bf16.mxu0 0
  %237 = vmatpush1.bf16.msra.mxu0 0
  %238 = vmatprep.subr.bf16.mxu0 0
  %239 = vmatpush1.bf16.msra.mxu0 0
  %240 = vmatprep.subr.bf16.mxu0 0
  %241 = vmatpush1.bf16.msra.mxu0 0
  %242 = vmatprep.subr.bf16.mxu0 0
  %243 = vmatpush1.bf16.msra.mxu0 0
  %244 = vmatprep.mubr.bf16.mxu0 0
  %245 = vmatmul.mubr.bf16.gmra.mrb[0].mxu0 %v112
  %v246 = vpop.f32.mrb[0].mxu0
  %v247 = vadd.f32 %v43, %v246
  %v248 = vpop.f32.mrb[0].mxu0
  %v249 = vpop.f32.mrb[0].mxu0
  %v250 = vpop.f32.mrb[0].mxu0
  %251 = vdwg.mxu0
  %252 = vst [vmem:[%s5] sm:$0xff] %v165
  %253 = vst [vmem:[%s5 + $0x8] sm:$0xff] %v167
  %254 = vst [vmem:[%s5 + $0x10] sm:$0xff] %v206
  %255 = vst [vmem:[%s5 + $0x18] sm:$0xff] %v208
  %vm256 = vcmask 834560
  %257 = vst.msk [vmem:[%s5 + $0x20] sm:$0xff] %vm256, %v247
  %v258 = vlaneseq
  %v259 = vand.u32 %v258, 127
  %v260 = vadd.s32 %v259, 128
  %v261 = vadd.s32 %v259, 256
  %v262 = vadd.s32 %v259, 384
  %v263 = vadd.s32 %v259, 512
  %vm264 = vcmp.lt.s32.totalorder %v259, 0
  %v265 = vsub.s32 0, %v259
  %v266 = vsel %vm264, %v265, %v259
  %v267 = vmul.u32.u64.compose %v266, 3372735055
  %v268 = vextract.low.u32 %v267
  %v269 = vextract.high.u32 %v267
  %v270 = vshrl.u32 %v269, 8
  %v271 = vmul.u32 %v270, 326
  %v272 = vsub.s32 %v266, %v271
  %v273 = vsub.s32 0, %v272
  %v274 = vsel %vm264, %v273, %v272
  %vm275 = vcmp.lt.s32.totalorder %v260, 0
  %v276 = vsub.s32 0, %v260
  %v277 = vsel %vm275, %v276, %v260
  %v278 = vmul.u32.u64.compose %v277, 3372735055
  %v279 = vextract.low.u32 %v278
  %v280 = vextract.high.u32 %v278
  %v281 = vshrl.u32 %v280, 8
  %v282 = vmul.u32 %v281, 326
  %v283 = vsub.s32 %v277, %v282
  %v284 = vsub.s32 0, %v283
  %v285 = vsel %vm275, %v284, %v283
  %vm286 = vcmp.lt.s32.totalorder %v261, 0
  %v287 = vsub.s32 0, %v261
  %v288 = vsel %vm286, %v287, %v261
  %v289 = vmul.u32.u64.compose %v288, 3372735055
  %v290 = vextract.low.u32 %v289
  %v291 = vextract.high.u32 %v289
  %v292 = vshrl.u32 %v291, 8
  %v293 = vmul.u32 %v292, 326
  %v294 = vsub.s32 %v288, %v293
  %v295 = vsub.s32 0, %v294
  %v296 = vsel %vm286, %v295, %v294
  %vm297 = vcmp.lt.s32.totalorder %v262, 0
  %v298 = vsub.s32 0, %v262
  %v299 = vsel %vm297, %v298, %v262
  %v300 = vmul.u32.u64.compose %v299, 3372735055
  %v301 = vextract.low.u32 %v300
  %v302 = vextract.high.u32 %v300
  %v303 = vshrl.u32 %v302, 8
  %v304 = vmul.u32 %v303, 326
  %v305 = vsub.s32 %v299, %v304
  %v306 = vsub.s32 0, %v305
  %v307 = vsel %vm297, %v306, %v305
  %vm308 = vcmp.lt.s32.totalorder %v263, 0
  %v309 = vsub.s32 0, %v263
  %v310 = vsel %vm308, %v309, %v263
  %v311 = vmul.u32.u64.compose %v310, 3372735055
  %v312 = vextract.low.u32 %v311
  %v313 = vextract.high.u32 %v311
  %v314 = vshrl.u32 %v313, 8
  %v315 = vmul.u32 %v314, 326
  %v316 = vsub.s32 %v310, %v315
  %v317 = vsub.s32 0, %v316
  %v318 = vsel %vm308, %v317, %v316
  %vm319 = vcmp.ne.s32.totalorder %v274, 0
  %vm320 = vcmp.ne.s32.totalorder %v285, 0
  %vm321 = vcmp.ne.s32.totalorder %v296, 0
  %vm322 = vcmp.ne.s32.totalorder %v307, 0
  %vm323 = vcmp.ne.s32.totalorder %v318, 0
  %vm324 = vcmp.lt.s32.totalorder %v274, 0
  %vm325 = vcmp.lt.s32.totalorder %v285, 0
  %vm326 = vcmp.lt.s32.totalorder %v296, 0
  %vm327 = vcmp.lt.s32.totalorder %v307, 0
  %vm328 = vcmp.lt.s32.totalorder %v318, 0
  %vm329 = vmand %vm324, %vm319
  %vm330 = vmand %vm325, %vm320
  %vm331 = vmand %vm326, %vm321
  %vm332 = vmand %vm327, %vm322
  %vm333 = vmand %vm328, %vm323
  %v334 = vadd.s32 %v274, 326
  %v335 = vadd.s32 %v285, 326
  %v336 = vadd.s32 %v296, 326
  %v337 = vadd.s32 %v307, 326
  %v338 = vadd.s32 %v318, 326
  %v339 = vsel %vm329, %v334, %v274
  %v340 = vsel %vm330, %v335, %v285
  %v341 = vsel %vm331, %v336, %v296
  %v342 = vsel %vm332, %v337, %v307
  %v343 = vsel %vm333, %v338, %v318
  %vm344 = vcmp.lt.s32.totalorder %v339, 288
  %vm345 = vcmp.lt.s32.totalorder %v340, 288
  %vm346 = vcmp.lt.s32.totalorder %v341, 288
  %vm347 = vcmp.lt.s32.totalorder %v342, 288
  %vm348 = vcmp.lt.s32.totalorder %v343, 288
  %vm349 = vcmp.lt.s32.totalorder %v339, 0
  %v350 = vsub.s32 0, %v339
  %v351 = vsel %vm349, %v350, %v339
  %v352 = vmul.u32.u64.compose %v351, 3817748708
  %v353 = vextract.low.u32 %v352
  %v354 = vextract.high.u32 %v352
  %v355 = vshrl.u32 %v354, 4
  %v356 = vmul.u32 %v355, 18
  %v357 = vsub.s32 %v351, %v356
  %v358 = vsub.s32 0, %v357
  %v359 = vsel %vm349, %v358, %v357
  %vm360 = vcmp.lt.s32.totalorder %v340, 0
  %v361 = vsub.s32 0, %v340
  %v362 = vsel %vm360, %v361, %v340
  %v363 = vmul.u32.u64.compose %v362, 3817748708
  %v364 = vextract.low.u32 %v363
  %v365 = vextract.high.u32 %v363
  %v366 = vshrl.u32 %v365, 4
  %v367 = vmul.u32 %v366, 18
  %v368 = vsub.s32 %v362, %v367
  %v369 = vsub.s32 0, %v368
  %v370 = vsel %vm360, %v369, %v368
  %vm371 = vcmp.lt.s32.totalorder %v341, 0
  %v372 = vsub.s32 0, %v341
  %v373 = vsel %vm371, %v372, %v341
  %v374 = vmul.u32.u64.compose %v373, 3817748708
  %v375 = vextract.low.u32 %v374
  %v376 = vextract.high.u32 %v374
  %v377 = vshrl.u32 %v376, 4
  %v378 = vmul.u32 %v377, 18
  %v379 = vsub.s32 %v373, %v378
  %v380 = vsub.s32 0, %v379
  %v381 = vsel %vm371, %v380, %v379
  %vm382 = vcmp.lt.s32.totalorder %v342, 0
  %v383 = vsub.s32 0, %v342
  %v384 = vsel %vm382, %v383, %v342
  %v385 = vmul.u32.u64.compose %v384, 3817748708
  %v386 = vextract.low.u32 %v385
  %v387 = vextract.high.u32 %v385
  %v388 = vshrl.u32 %v387, 4
  %v389 = vmul.u32 %v388, 18
  %v390 = vsub.s32 %v384, %v389
  %v391 = vsub.s32 0, %v390
  %v392 = vsel %vm382, %v391, %v390
  %vm393 = vcmp.lt.s32.totalorder %v343, 0
  %v394 = vsub.s32 0, %v343
  %v395 = vsel %vm393, %v394, %v343
  %v396 = vmul.u32.u64.compose %v395, 3817748708
  %v397 = vextract.low.u32 %v396
  %v398 = vextract.high.u32 %v396
  %v399 = vshrl.u32 %v398, 4
  %v400 = vmul.u32 %v399, 18
  %v401 = vsub.s32 %v395, %v400
  %v402 = vsub.s32 0, %v401
  %v403 = vsel %vm393, %v402, %v401
  %vm404 = vcmp.ne.s32.totalorder %v359, 0
  %vm405 = vcmp.ne.s32.totalorder %v370, 0
  %vm406 = vcmp.ne.s32.totalorder %v381, 0
  %vm407 = vcmp.ne.s32.totalorder %v392, 0
  %vm408 = vcmp.ne.s32.totalorder %v403, 0
  %vm409 = vcmp.lt.s32.totalorder %v359, 0
  %vm410 = vcmp.lt.s32.totalorder %v370, 0
  %vm411 = vcmp.lt.s32.totalorder %v381, 0
  %vm412 = vcmp.lt.s32.totalorder %v392, 0
  %vm413 = vcmp.lt.s32.totalorder %v403, 0
  %vm414 = vmand %vm409, %vm404
  %vm415 = vmand %vm410, %vm405
  %vm416 = vmand %vm411, %vm406
  %vm417 = vmand %vm412, %vm407
  %vm418 = vmand %vm413, %vm408
  %v419 = vadd.s32 %v359, 18
  %v420 = vadd.s32 %v370, 18
  %v421 = vadd.s32 %v381, 18
  %v422 = vadd.s32 %v392, 18
  %v423 = vadd.s32 %v403, 18
  %v424 = vsel %vm414, %v419, %v359
  %v425 = vsel %vm415, %v420, %v370
  %v426 = vsel %vm416, %v421, %v381
  %v427 = vsel %vm417, %v422, %v392
  %v428 = vsel %vm418, %v423, %v403
  %vm429 = vcmp.lt.s32.totalorder %v424, 16
  %vm430 = vcmp.lt.s32.totalorder %v425, 16
  %vm431 = vcmp.lt.s32.totalorder %v426, 16
  %vm432 = vcmp.lt.s32.totalorder %v427, 16
  %vm433 = vcmp.lt.s32.totalorder %v428, 16
  %vm434 = vmand %vm344, %vm429
  %vm435 = vmand %vm345, %vm430
  %vm436 = vmand %vm346, %vm431
  %vm437 = vmand %vm347, %vm432
  %vm438 = vmand %vm348, %vm433
  %v439 = vmax.f32 %v165, 0.0
  %v440 = vmax.f32 %v167, 0.0
  %v441 = vmax.f32 %v206, 0.0
  %v442 = vmax.f32 %v208, 0.0
  %v443 = vmax.f32 %v247, 0.0
  %v444 = vsel %vm434, 1, 0
  %v445 = vsel %vm435, 1, 0
  %v446 = vsel %vm436, 1, 0
  %v447 = vsel %vm437, 1, 0
  %v448 = vsel %vm438, 1, 0
  %vm449 = vcmp.eq.s32.totalorder %v444, 1
  %vm450 = vcmp.eq.s32.totalorder %v445, 1
  %vm451 = vcmp.eq.s32.totalorder %v446, 1
  %vm452 = vcmp.eq.s32.totalorder %v447, 1
  %vm453 = vcmp.eq.s32.totalorder %v448, 1
  %v454 = vsel %vm449, %v439, 0.0
  %v455 = vsel %vm450, %v440, 0.0
  %v456 = vsel %vm451, %v441, 0.0
  %v457 = vsel %vm452, %v442, 0.0
  %v458 = vsel %vm453, %v443, 0.0
  %v459 = vpack.c.bf16 %v454, %v454
  %v460 = vpack.c.bf16 %v455, %v455
  %v461 = vpack.c.bf16 %v456, %v456
  %v462 = vpack.c.bf16 %v457, %v457
  %v463 = vpack.c.bf16 %v458, %v458
  %vm464 = vcmask 150528
  %465 = vst.msk [vmem:[#allocation2] sm:$0xf] %vm464, 0
  %vm466 = vcmask 1044424
  %vm467 = vcmask 97284
  %vm468 = vmor %vm467, %vm466
  %469 = vst.msk [vmem:[#allocation2 + $0x10] sm:$0xff] %vm468, 0
  %v475 = vunpack.c.l.b16 %v459
  %v476 = vunpack.c.l.b16 %v460
  %v477 = vunpack.c.l.b16 %v461
  %v478 = vunpack.c.l.b16 %v462
  %v479 = vunpack.c.l.b16 %v463
  %v480 = vpack.c.b16 %v476, %v475
  %v481 = vpack.c.b16 %v478, %v477
  %v482 = vpack.c.b16 %v479, %v479
  %483 = vrot.lane.b32.xlu0 %v480, 19
  %v484 = vpop.permute.xlu0 %483
  %485 = vrot.lane.b32.xlu0 %v481, 19
  %v486 = vpop.permute.xlu0 %485
  %487 = vrot.lane.b32.xlu0 %v482, 19
  %v488 = vpop.permute.xlu0 %487
  %v489 = vrot.slane %v484, 4
  %v490 = vrot.slane %v486, 4
  %vm491 = vcmask 154624
  %v492 = vsel %vm491, %v489, %v484
  %vm493 = vcmask 1043456
  %v494 = vsel %vm493, %v489, %v490
  %v495 = vsel %vm491, %v494, %v486
  %v496 = vsel %vm491, %v490, %v488
  %vm500 = vcmask 1043608
  %vm501 = vcmask 1047556
  %vm502 = vmor %vm501, %vm500
  %503 = vst.msk [vmem:[#allocation2] sm:$0xff] %vm502, %v492
  %504 = vst [vmem:[#allocation2 + $0x8] sm:$0xff] %v495
  %vm505 = vcmask 986112
  %506 = vst.msk [vmem:[#allocation2 + $0x10] sm:$0xf] %vm505, %v496
  %v507 = vld [vmem:[#allocation2] sm:$0xff]
  %v508 = vld [vmem:[#allocation2 + $0x8] sm:$0xff]
  %v509 = vld [vmem:[#allocation2 + $0x10] sm:$0xf]
  %v510 = vld [vmem:[#allocation2 + $0x10] sm:$0xff]
  %v514 = vunpack.c.l.b16 %v507
  %v515 = vunpack.c.h.b16 %v507
  %v516 = vunpack.c.l.b16 %v508
  %v517 = vunpack.c.h.b16 %v508
  %v518 = vunpack.c.l.b16 %v509
  %v519 = vpack.c.b16 %v514, %v514
  %v520 = vpack.c.b16 %v515, %v515
  %v521 = vpack.c.b16 %v516, %v516
  %v522 = vpack.c.b16 %v517, %v517
  %v523 = vpack.c.b16 %v518, %v518
  %524 = vrot.lane.b32.xlu0 %v519, 127
  %v525 = vpop.permute.xlu0 %524
  %526 = vrot.lane.b32.xlu0 %v520, 127
  %v527 = vpop.permute.xlu0 %526
  %528 = vrot.lane.b32.xlu0 %v521, 127
  %v529 = vpop.permute.xlu0 %528
  %530 = vrot.lane.b32.xlu0 %v522, 127
  %v531 = vpop.permute.xlu0 %530
  %532 = vrot.lane.b32.xlu0 %v523, 127
  %v533 = vpop.permute.xlu0 %532
  %vm534 = vcmask 1039360
  %v535 = vsel %vm534, %v525, %v527
  %v536 = vsel %vm534, %v527, %v529
  %v537 = vsel %vm534, %v529, %v531
  %v538 = vsel %vm534, %v531, %v533
  %539 = vrot.lane.b32.xlu0 %v519, 126
  %v540 = vpop.permute.xlu0 %539
  %541 = vrot.lane.b32.xlu0 %v520, 126
  %v542 = vpop.permute.xlu0 %541
  %543 = vrot.lane.b32.xlu0 %v521, 126
  %v544 = vpop.permute.xlu0 %543
  %545 = vrot.lane.b32.xlu0 %v522, 126
  %v546 = vpop.permute.xlu0 %545
  %547 = vrot.lane.b32.xlu0 %v523, 126
  %v548 = vpop.permute.xlu0 %547
  %vm549 = vcmask 1031168
  %v550 = vsel %vm549, %v540, %v542
  %v551 = vsel %vm549, %v542, %v544
  %v552 = vsel %vm549, %v544, %v546
  %v553 = vsel %vm549, %v546, %v548
  %554 = vrot.lane.b32.xlu0 %v519, 110
  %v555 = vpop.permute.xlu0 %554
  %556 = vrot.lane.b32.xlu0 %v520, 110
  %v557 = vpop.permute.xlu0 %556
  %558 = vrot.lane.b32.xlu0 %v521, 110
  %v559 = vpop.permute.xlu0 %558
  %560 = vrot.lane.b32.xlu0 %v522, 110
  %v561 = vpop.permute.xlu0 %560
  %562 = vrot.lane.b32.xlu0 %v523, 110
  %v563 = vpop.permute.xlu0 %562
  %vm564 = vcmask 900096
  %v565 = vsel %vm564, %v555, %v557
  %v566 = vsel %vm564, %v557, %v559
  %v567 = vsel %vm564, %v559, %v561
  %v568 = vsel %vm564, %v561, %v563
  %569 = vrot.lane.b32.xlu0 %v519, 109
  %v570 = vpop.permute.xlu0 %569
  %571 = vrot.lane.b32.xlu0 %v520, 109
  %v572 = vpop.permute.xlu0 %571
  %573 = vrot.lane.b32.xlu0 %v521, 109
  %v574 = vpop.permute.xlu0 %573
  %575 = vrot.lane.b32.xlu0 %v522, 109
  %v576 = vpop.permute.xlu0 %575
  %577 = vrot.lane.b32.xlu0 %v523, 109
  %v578 = vpop.permute.xlu0 %577
  %vm579 = vcmask 891904
  %v580 = vsel %vm579, %v570, %v572
  %v581 = vsel %vm579, %v572, %v574
  %v582 = vsel %vm579, %v574, %v576
  %v583 = vsel %vm579, %v576, %v578
  %584 = vrot.lane.b32.xlu0 %v519, 108
  %v585 = vpop.permute.xlu0 %584
  %586 = vrot.lane.b32.xlu0 %v520, 108
  %v587 = vpop.permute.xlu0 %586
  %588 = vrot.lane.b32.xlu0 %v521, 108
  %v589 = vpop.permute.xlu0 %588
  %590 = vrot.lane.b32.xlu0 %v522, 108
  %v591 = vpop.permute.xlu0 %590
  %592 = vrot.lane.b32.xlu0 %v523, 108
  %v593 = vpop.permute.xlu0 %592
  %vm594 = vcmask 883712
  %v595 = vsel %vm594, %v585, %v587
  %v596 = vsel %vm594, %v587, %v589
  %v597 = vsel %vm594, %v589, %v591
  %v598 = vsel %vm594, %v591, %v593
  %v600 = vunpack.c.l.b16 %v510
  %v601 = vunpack.c.h.b16 %v510
  %v602 = vpack.c.b16 %v600, %v600
  %v603 = vpack.c.b16 %v601, %v601
  %604 = vrot.lane.b32.xlu0 %v519, 92
  %v605 = vpop.permute.xlu0 %604
  %606 = vrot.lane.b32.xlu0 %v520, 92
  %v607 = vpop.permute.xlu0 %606
  %608 = vrot.lane.b32.xlu0 %v521, 92
  %v609 = vpop.permute.xlu0 %608
  %610 = vrot.lane.b32.xlu0 %v522, 92
  %v611 = vpop.permute.xlu0 %610
  %612 = vrot.lane.b32.xlu0 %v602, 92
  %v613 = vpop.permute.xlu0 %612
  %614 = vrot.lane.b32.xlu0 %v603, 92
  %v615 = vpop.permute.xlu0 %614
  %vm616 = vcmask 752640
  %v617 = vsel %vm616, %v605, %v607
  %v618 = vsel %vm616, %v607, %v609
  %v619 = vsel %vm616, %v609, %v611
  %v620 = vsel %vm616, %v611, %v613
  %v621 = vsel %vm616, %v613, %v615
  %622 = vrot.lane.b32.xlu0 %v519, 91
  %v623 = vpop.permute.xlu0 %622
  %624 = vrot.lane.b32.xlu0 %v520, 91
  %v625 = vpop.permute.xlu0 %624
  %626 = vrot.lane.b32.xlu0 %v521, 91
  %v627 = vpop.permute.xlu0 %626
  %628 = vrot.lane.b32.xlu0 %v522, 91
  %v629 = vpop.permute.xlu0 %628
  %630 = vrot.lane.b32.xlu0 %v602, 91
  %v631 = vpop.permute.xlu0 %630
  %632 = vrot.lane.b32.xlu0 %v603, 91
  %v633 = vpop.permute.xlu0 %632
  %vm634 = vcmask 744448
  %v635 = vsel %vm634, %v623, %v625
  %v636 = vsel %vm634, %v625, %v627
  %v637 = vsel %vm634, %v627, %v629
  %v638 = vsel %vm634, %v629, %v631
  %v639 = vsel %vm634, %v631, %v633
  %640 = vrot.lane.b32.xlu0 %v519, 90
  %v641 = vpop.permute.xlu0 %640
  %642 = vrot.lane.b32.xlu0 %v520, 90
  %v643 = vpop.permute.xlu0 %642
  %644 = vrot.lane.b32.xlu0 %v521, 90
  %v645 = vpop.permute.xlu0 %644
  %646 = vrot.lane.b32.xlu0 %v522, 90
  %v647 = vpop.permute.xlu0 %646
  %648 = vrot.lane.b32.xlu0 %v602, 90
  %v649 = vpop.permute.xlu0 %648
  %650 = vrot.lane.b32.xlu0 %v603, 90
  %v651 = vpop.permute.xlu0 %650
  %vm652 = vcmask 736256
  %v653 = vsel %vm652, %v641, %v643
  %v654 = vsel %vm652, %v643, %v645
  %v655 = vsel %vm652, %v645, %v647
  %v656 = vsel %vm652, %v647, %v649
  %v657 = vsel %vm652, %v649, %v651
  %vm658 = vcmask 1043456
  %v661 = vsel %vm658, %v519, %v535
  %v665 = vsel %vm658, %v520, %v536
  %v669 = vsel %vm658, %v521, %v537
  %v673 = vsel %vm658, %v522, %v538
  %v677 = vsel %vm658, %v523, %v533
  %v681 = vsel %vm658, %v550, %v565
  %v685 = vsel %vm658, %v551, %v566
  %v689 = vsel %vm658, %v552, %v567
  %v693 = vsel %vm658, %v553, %v568
  %v697 = vsel %vm658, %v548, %v563
  %v701 = vsel %vm658, %v580, %v595
  %v705 = vsel %vm658, %v581, %v596
  %v709 = vsel %vm658, %v582, %v597
  %v713 = vsel %vm658, %v583, %v598
  %v717 = vsel %vm658, %v578, %v593
  %v721 = vsel %vm658, %v617, %v635
  %v725 = vsel %vm658, %v618, %v636
  %v729 = vsel %vm658, %v619, %v637
  %v733 = vsel %vm658, %v620, %v638
  %v737 = vsel %vm658, %v621, %v639
  %v739 = vld [vmem:[%s3] sm:$0xf]
  %v740 = vld [vmem:[%s4] sm:$0xff]
  %742 = vset.pattern.permute.xlu0 0
  %743 = vperm.xlu0 %742, %v740
  %v744 = vpop.permute.xlu0 %743
  %vm746 = vcmask 588800
  %v748 = vsel %vm746, %v739, 0
  %v751 = vsel %vm658, %v653, 0
  %v754 = vsel %vm658, %v654, 0
  %v757 = vsel %vm658, %v655, 0
  %v760 = vsel %vm658, %v656, 0
  %v763 = vsel %vm658, %v657, 0
  %765 = vmatprep.subr.bf16.mxu0 %v665
  %766 = vmatpush1.bf16.msra.mxu0 %v661
  %767 = vmatprep.subr.bf16.mxu0 %v685
  %768 = vmatpush1.bf16.msra.mxu0 %v681
  %769 = vmatprep.subr.bf16.mxu0 %v705
  %770 = vmatpush1.bf16.msra.mxu0 %v701
  %771 = vmatprep.subr.bf16.mxu0 %v725
  %772 = vmatpush1.bf16.msra.mxu0 %v721
  %773 = vmatprep.subr.bf16.mxu0 %v754
  %774 = vmatpush1.bf16.msra.mxu0 %v751
  %775 = vmatprep.subr.bf16.mxu0 0
  %776 = vmatpush1.bf16.msra.mxu0 0
  %777 = vmatprep.subr.bf16.mxu0 0
  %778 = vmatpush1.bf16.msra.mxu0 0
  %779 = vmatprep.subr.bf16.mxu0 0
  %780 = vmatpush1.bf16.msra.mxu0 0
  %781 = vmatprep.subr.bf16.mxu0 0
  %782 = vmatpush1.bf16.msra.mxu0 0
  %783 = vmatprep.subr.bf16.mxu0 0
  %784 = vmatpush1.bf16.msra.mxu0 0
  %785 = vmatprep.subr.bf16.mxu0 0
  %786 = vmatpush1.bf16.msra.mxu0 0
  %787 = vmatprep.subr.bf16.mxu0 0
  %788 = vmatpush1.bf16.msra.mxu0 0
  %789 = vmatprep.subr.bf16.mxu0 0
  %790 = vmatpush1.bf16.msra.mxu0 0
  %791 = vmatprep.subr.bf16.mxu0 0
  %792 = vmatpush1.bf16.msra.mxu0 0
  %793 = vmatprep.subr.bf16.mxu0 0
  %794 = vmatpush1.bf16.msra.mxu0 0
  %795 = vmatprep.subr.bf16.mxu0 0
  %796 = vmatpush1.bf16.msra.mxu0 0
  %797 = vmatprep.mubr.bf16.mxu0 0
  %798 = vmatmul.mubr.bf16.gmra.mrb[0].mxu0 %v748
  %v799 = vpop.f32.mrb[0].mxu0
  %v800 = vadd.f32 %v744, %v799
  %v801 = vpop.f32.mrb[0].mxu0
  %v802 = vadd.f32 %v744, %v801
  %v803 = vpop.f32.mrb[0].mxu0
  %v804 = vpop.f32.mrb[0].mxu0
  %805 = vdwg.mxu0
  %806 = vmatprep.subr.bf16.mxu0 %v673
  %807 = vmatpush1.bf16.msra.mxu0 %v669
  %808 = vmatprep.subr.bf16.mxu0 %v693
  %809 = vmatpush1.bf16.msra.mxu0 %v689
  %810 = vmatprep.subr.bf16.mxu0 %v713
  %811 = vmatpush1.bf16.msra.mxu0 %v709
  %812 = vmatprep.subr.bf16.mxu0 %v733
  %813 = vmatpush1.bf16.msra.mxu0 %v729
  %814 = vmatprep.subr.bf16.mxu0 %v760
  %815 = vmatpush1.bf16.msra.mxu0 %v757
  %816 = vmatprep.subr.bf16.mxu0 0
  %817 = vmatpush1.bf16.msra.mxu0 0
  %818 = vmatprep.subr.bf16.mxu0 0
  %819 = vmatpush1.bf16.msra.mxu0 0
  %820 = vmatprep.subr.bf16.mxu0 0
  %821 = vmatpush1.bf16.msra.mxu0 0
  %822 = vmatprep.subr.bf16.mxu0 0
  %823 = vmatpush1.bf16.msra.mxu0 0
  %824 = vmatprep.subr.bf16.mxu0 0
  %825 = vmatpush1.bf16.msra.mxu0 0
  %826 = vmatprep.subr.bf16.mxu0 0
  %827 = vmatpush1.bf16.msra.mxu0 0
  %828 = vmatprep.subr.bf16.mxu0 0
  %829 = vmatpush1.bf16.msra.mxu0 0
  %830 = vmatprep.subr.bf16.mxu0 0
  %831 = vmatpush1.bf16.msra.mxu0 0
  %832 = vmatprep.subr.bf16.mxu0 0
  %833 = vmatpush1.bf16.msra.mxu0 0
  %834 = vmatprep.subr.bf16.mxu0 0
  %835 = vmatpush1.bf16.msra.mxu0 0
  %836 = vmatprep.subr.bf16.mxu0 0
  %837 = vmatpush1.bf16.msra.mxu0 0
  %838 = vmatprep.mubr.bf16.mxu0 0
  %839 = vmatmul.mubr.bf16.gmra.mrb[0].mxu0 %v748
  %v840 = vpop.f32.mrb[0].mxu0
  %v841 = vadd.f32 %v744, %v840
  %v842 = vpop.f32.mrb[0].mxu0
  %v843 = vadd.f32 %v744, %v842
  %v844 = vpop.f32.mrb[0].mxu0
  %v845 = vpop.f32.mrb[0].mxu0
  %846 = vdwg.mxu0
  %847 = vmatprep.subr.bf16.mxu0 0
  %848 = vmatpush1.bf16.msra.mxu0 %v677
  %849 = vmatprep.subr.bf16.mxu0 0
  %850 = vmatpush1.bf16.msra.mxu0 %v697
  %851 = vmatprep.subr.bf16.mxu0 0
  %852 = vmatpush1.bf16.msra.mxu0 %v717
  %853 = vmatprep.subr.bf16.mxu0 0
  %854 = vmatpush1.bf16.msra.mxu0 %v737
  %855 = vmatprep.subr.bf16.mxu0 0
  %856 = vmatpush1.bf16.msra.mxu0 %v763
  %857 = vmatprep.subr.bf16.mxu0 0
  %858 = vmatpush1.bf16.msra.mxu0 0
  %859 = vmatprep.subr.bf16.mxu0 0
  %860 = vmatpush1.bf16.msra.mxu0 0
  %861 = vmatprep.subr.bf16.mxu0 0
  %862 = vmatpush1.bf16.msra.mxu0 0
  %863 = vmatprep.subr.bf16.mxu0 0
  %864 = vmatpush1.bf16.msra.mxu0 0
  %865 = vmatprep.subr.bf16.mxu0 0
  %866 = vmatpush1.bf16.msra.mxu0 0
  %867 = vmatprep.subr.bf16.mxu0 0
  %868 = vmatpush1.bf16.msra.mxu0 0
  %869 = vmatprep.subr.bf16.mxu0 0
  %870 = vmatpush1.bf16.msra.mxu0 0
  %871 = vmatprep.subr.bf16.mxu0 0
  %872 = vmatpush1.bf16.msra.mxu0 0
  %873 = vmatprep.subr.bf16.mxu0 0
  %874 = vmatpush1.bf16.msra.mxu0 0
  %875 = vmatprep.subr.bf16.mxu0 0
  %876 = vmatpush1.bf16.msra.mxu0 0
  %877 = vmatprep.subr.bf16.mxu0 0
  %878 = vmatpush1.bf16.msra.mxu0 0
  %879 = vmatprep.mubr.bf16.mxu0 0
  %880 = vmatmul.mubr.bf16.gmra.mrb[0].mxu0 %v748
  %v881 = vpop.f32.mrb[0].mxu0
  %v882 = vadd.f32 %v744, %v881
  %v883 = vpop.f32.mrb[0].mxu0
  %v884 = vpop.f32.mrb[0].mxu0
  %v885 = vpop.f32.mrb[0].mxu0
  %886 = vdwg.mxu0
  %v887 = vmax.f32 %v800, 0.0
  %v888 = vmax.f32 %v802, 0.0
  %v889 = vmax.f32 %v841, 0.0
  %v890 = vmax.f32 %v843, 0.0
  %v891 = vmax.f32 %v882, 0.0
  %892 = vst [vmem:[%s6] sm:$0xff] %v887
  %893 = vst [vmem:[%s6 + $0x8] sm:$0xff] %v888
  %894 = vst [vmem:[%s6 + $0x10] sm:$0xff] %v889
  %895 = vst [vmem:[%s6 + $0x18] sm:$0xff] %v890
  %896 = vst.msk [vmem:[%s6 + $0x20] sm:$0xff] %vm256, %v891
  // Predicated region
  $region22: #{model_fn.1} parent=0 // pred_check
    _
  $region23: #{model_fn.1} parent=0 // pred_check_branch
    %898 = sbr.rel (0) target = $region25
  $region24: #{model_fn.1} parent=0 // pred_region
    _
  $region25: #{model_fn.1} parent=0 // pred_fallthru
    _
  // Predicated region
  $region26: #{model_fn.1} parent=0 // pred_check
    _
  $region27: #{model_fn.1} parent=0 // pred_check_branch
    %900 = sbr.rel (0) target = $region29
  $region28: #{model_fn.1} parent=0 // pred_region
    _
  $region29: #{model_fn.1} parent=0 // pred_fallthru
    _
  // Predicated region
  $region30: #{model_fn.1} parent=0 // pred_check
    _
  $region31: #{model_fn.1} parent=0 // pred_check_branch
    %902 = sbr.rel (0) target = $region33
  $region32: #{model_fn.1} parent=0 // pred_region
    _
  $region33: #{model_fn.1} parent=0 // pred_fallthru
    _
  // Predicated region
  $region34: #{model_fn.1} parent=0 // pred_check
    _
  $region35: #{model_fn.1} parent=0 // pred_check_branch
    %904 = sbr.rel (0) target = $region37
  $region36: #{model_fn.1} parent=0 // pred_region
    _
  $region37: #{model_fn.1} parent=0 // pred_fallthru
    _

</llo_original>
